<compile_context>
chip_gen: v6e
topology: v6e:2x2x1
jax: 0.10.0
libtpu: 0.0.40
codegen_flags: <defaults>
</compile_context>

<pallas_src>
import functools

import jax
import jax.numpy as jnp
from jax.experimental import pallas as pl
from jax.experimental.pallas import tpu as pltpu

_BN_EPS = 1e-5
_LANE = 128      # lane width (last dim)
_SUBLANE = 8     # f32 sublane width (second-to-last dim)


def _round_up(x, m):
    return (x + m - 1) // m * m


# ---------------------------------------------------------------------------
# Kernel: one grid-free, fully VMEM-resident pass over all six Linear layers.
# ---------------------------------------------------------------------------
def _autoencoder_kernel(
    s_ref, w_ref, b_ref, encoded_ref, action_ref,
    *, n_valid, layer_dims, matmul_dtype,
):
    x = s_ref[...]
    bp = x.shape[0]

    # Row mask only needed if the batch was padded up to a sublane multiple.
    if n_valid == bp:
        row_mask = None
    else:
        rows = jax.lax.broadcasted_iota(jnp.int32, (bp, 1), 0)
        row_mask = (rows < n_valid).astype(jnp.float32)
    inv_n = 1.0 / float(n_valid)

    def linear(h, li):
        # layer_dims[li] = (row offset into stacked weights, in_p, out_p);
        # all static -> zero-cost ref slicing.  Weights are bf16 in HBM,
        # accumulation is f32 on the MXU.
        off, in_p, out_p = layer_dims[li]
        w = w_ref[off:off + in_p, :out_p]
        b = b_ref[li:li + 1, :out_p]
        acc = jnp.dot(
            h[:, :in_p].astype(matmul_dtype), w,
            preferred_element_type=jnp.float32)
        return acc + b

    def relu_bn(h):
        # ReLU then BatchNorm1d (train mode: batch mean, biased variance,
        # gamma=1, beta=0).  Stats use the n_valid real rows only; padded
        # feature columns are exactly zero and normalize to zero.
        h = jnp.maximum(h, 0.0)
        hm = h if row_mask is None else h * row_mask
        mean = jnp.sum(hm, axis=0, keepdims=True) * inv_n
        centered = h - mean
        cm = centered if row_mask is None else centered * row_mask
        var = jnp.sum(cm * cm, axis=0, keepdims=True) * inv_n
        return centered * jax.lax.rsqrt(var + _BN_EPS)   # rsqrt -> EUP slot

    # ---- Encoder: (Linear->ReLU->BN) x3, then Linear ----
    h = relu_bn(linear(x, 0))
    h = relu_bn(linear(h, 1))
    h = relu_bn(linear(h, 2))
    encoded = linear(h, 3)
    encoded_ref[...] = encoded

    # ---- Decoder.action_decoder: Linear->ReLU->BN->Linear ----
    hd = relu_bn(linear(encoded, 4))
    action_ref[...] = linear(hd, 5)


# ---------------------------------------------------------------------------
# Parameter init (mirrors init_weights) and one-time prep (hoisted out of the
# per-call path).
# ---------------------------------------------------------------------------
def init_autoencoder_params(key, state_input_size, action_input_size,
                            num_actions, hidden_size, hidden_rep_size):
    """Linear weight ~ N(0.1, 0.01), bias = 0 (PyTorch (out,in) layout).

    Only the layers used by Autoencoder.forward are created.
    """
    del action_input_size  # unused by the forward pass
    dims = [
        (state_input_size, hidden_size),            # encoder L1
        (hidden_size, hidden_size // 2),            # encoder L2
        (hidden_size // 2, hidden_size // 4),       # encoder L3
        (hidden_size // 4, hidden_rep_size),        # encoder L4 -> encoded
        (hidden_rep_size, hidden_size),             # action_decoder L1
        (hidden_size, num_actions),                 # action_decoder L2 -> action
    ]
    keys = jax.random.split(key, len(dims))
    params = []
    for k, (din, dout) in zip(keys, dims):
        w = 0.1 + 0.01 * jax.random.normal(k, (dout, din), jnp.float32)
        b = jnp.zeros((dout,), jnp.float32)
        params.append((w, b))
    return params


def prep_autoencoder_params(params, *, weight_dtype=jnp.bfloat16):
    """One-time preprocessing; cache the result and reuse every forward call.

    * transpose to (in, out); out dim zero-padded to a 128-lane multiple, in
      dim padded only to the storage-dtype sublane packing (16 bf16 / 8 f32)
    * all layers concatenated into one weight array and one (8,128) bias
      array -> 3 input DMAs per call instead of 13 tiny ones
    * weights stored pre-cast to bf16 in HBM (f32 accumulation in-kernel)
    """
    weight_dtype = jnp.dtype(weight_dtype)
    sub = 16 if weight_dtype.itemsize == 2 else _SUBLANE

    layer_dims = []
    off = 0
    for (w, _) in params:
        dout, din = w.shape
        in_p = _round_up(din, sub)
        out_p = _round_up(dout, _LANE)
        layer_dims.append((off, in_p, out_p))
        off += in_p
    max_out_p = max(d[2] for d in layer_dims)

    w_blocks, b_rows = [], []
    for (w, b), (_, in_p, out_p) in zip(params, layer_dims):
        dout, din = w.shape
        wt = jnp.zeros((in_p, max_out_p), weight_dtype)
        wt = wt.at[:din, :dout].set(w.T.astype(weight_dtype))
        w_blocks.append(wt)
        bb = jnp.zeros((max_out_p,), jnp.float32).at[:dout].set(b)
        b_rows.append(bb)

    w_stacked = jnp.concatenate(w_blocks, axis=0)
    n_layers = len(params)
    b_stacked = jnp.zeros((_round_up(n_layers, _SUBLANE), max_out_p),
                          jnp.float32)
    b_stacked = b_stacked.at[:n_layers].set(jnp.stack(b_rows))

    meta = (
        tuple(layer_dims),
        int(params[3][0].shape[0]),   # hidden_rep_size (encoded width)
        int(params[5][0].shape[0]),   # num_actions (action width)
        str(weight_dtype),            # matmul dtype (hashable for jit)
        int(max_out_p),
    )
    return w_stacked, b_stacked, meta


# ---------------------------------------------------------------------------
# Forward wrapper (jitted so the input pad and output slices fuse with the
# pallas custom call).
# ---------------------------------------------------------------------------
@functools.partial(jax.jit, static_argnames=("meta",))
def _autoencoder_forward_impl(s, w_stacked, b_stacked, meta):
    layer_dims, hidden_rep_size, num_actions, dtype_name, max_out_p = meta
    matmul_dtype = jnp.dtype(dtype_name)

    B, D0 = s.shape
    Bp = _round_up(B, _SUBLANE)
    in_p0 = layer_dims[0][1]
    out_enc = layer_dims[3][2]
    out_act = layer_dims[5][2]

    s_pad = jnp.pad(s, ((0, Bp - B), (0, in_p0 - D0)))

    # Single-block working-set guard: keep well under v5e's 16 MiB scoped-VMEM
    # default (v6e/v7x have 32 MiB scoped; v7x only 64 MiB physical).
    resident_bytes = (
        Bp * in_p0 * 4
        + w_stacked.size * w_stacked.dtype.itemsize
        + b_stacked.size * 4
        + Bp * (out_enc + out_act) * 4
        + 4 * Bp * max_out_p * 4)                 # activation temporaries
    assert resident_bytes < 12 * 1024 * 1024, (
        "Working set too large for the single-block kernel; tile the batch "
        "with a two-pass (stats-accumulate / normalize) BatchNorm, sized for "
        "v7x's 64 MiB physical / 32 MiB scoped VMEM.")
    # TODO(synk): batch-tiled two-pass-BN path for large B (also required
    # before the batch axis can be sharded across v7x's two TensorCores).

    flops = sum(2 * Bp * in_p * out_p for (_, in_p, out_p) in layer_dims)
    bytes_accessed = (
        s_pad.size * 4
        + w_stacked.size * w_stacked.dtype.itemsize
        + b_stacked.size * 4
        + Bp * (out_enc + out_act) * 4)
    transcendentals = 4 * max_out_p               # one rsqrt per BN column

    kernel = functools.partial(
        _autoencoder_kernel, n_valid=B, layer_dims=layer_dims,
        matmul_dtype=matmul_dtype)

    vmem = pl.BlockSpec(memory_space=pltpu.MemorySpace.VMEM)
    encoded_p, action_p = pl.pallas_call(
        kernel,
        out_shape=(
            jax.ShapeDtypeStruct((Bp, out_enc), jnp.float32),   # encoded (padded)
            jax.ShapeDtypeStruct((Bp, out_act), jnp.float32),   # action (padded)
        ),
        in_specs=[vmem, vmem, vmem],
        out_specs=(vmem, vmem),
        cost_estimate=pl.CostEstimate(
            flops=flops, transcendentals=transcendentals,
            bytes_accessed=bytes_accessed),
    )(s_pad, w_stacked, b_stacked)

    encoded = encoded_p[:B, :hidden_rep_size]
    action = action_p[:B, :num_actions]
    return encoded, action


def autoencoder_forward(s, a, prepped_params):
    """Returns (encoded, None, action), matching Autoencoder.forward."""
    del a  # Encoder.forward ignores its action argument.
    w_stacked, b_stacked, meta = prepped_params
    encoded, action = _autoencoder_forward_impl(s, w_stacked, b_stacked, meta)
    # TODO(synk): Decoder.forward's host-side print('Predic: ...') (per-row
    # argmax logging) is a Python I/O side effect and is intentionally omitted.
    return encoded, None, action


# ---------------------------------------------------------------------------
# Self-test
# ---------------------------------------------------------------------------
if __name__ == "__main__":
    # Small shapes consistent with the module (hidden_size divisible by 4).
    B = 8
    STATE_INPUT, ACTION_INPUT = 32, 32
    NUM_ACTIONS, HIDDEN, HIDDEN_REP = 4, 32, 8

    key = jax.random.PRNGKey(0)
    k_s, k_a, k_p = jax.random.split(key, 3)
    s = jax.random.normal(k_s, (B, STATE_INPUT), jnp.float32)
    a = jax.random.normal(k_a, (B, ACTION_INPUT), jnp.float32)  # unused in fwd
    params = init_autoencoder_params(
        k_p, STATE_INPUT, ACTION_INPUT, NUM_ACTIONS, HIDDEN, HIDDEN_REP)

    prepped = prep_autoencoder_params(params)   # one-time, reused per call

    encoded, decoded_state, action = autoencoder_forward(s, a, prepped)
    encoded, action = jax.block_until_ready((encoded, action))
    assert decoded_state is None

    # Pure-JAX reference with identical numerics: bf16 operands / f32
    # accumulation in the matmuls, f32 train-mode BatchNorm.
    def ref_linear(x, w, b, dt):
        return jnp.dot(x.astype(dt), w.T.astype(dt),
                       preferred_element_type=jnp.float32) + b

    def ref_relu_bn(h):
        h = jnp.maximum(h, 0.0)
        mu = jnp.mean(h, axis=0, keepdims=True)
        var = jnp.mean((h - mu) ** 2, axis=0, keepdims=True)
        return (h - mu) * jax.lax.rsqrt(var + _BN_EPS)

    dt = jnp.bfloat16
    h = s
    for i in range(3):
        h = ref_relu_bn(ref_linear(h, *params[i], dt))
    enc_ref = ref_linear(h, *params[3], dt)
    hd = ref_relu_bn(ref_linear(enc_ref, *params[4], dt))
    act_ref = ref_linear(hd, *params[5], dt)

    assert encoded.shape == (B, HIDDEN_REP) and action.shape == (B, NUM_ACTIONS)
    assert jnp.allclose(encoded, enc_ref, atol=2e-3, rtol=2e-3), (
        float(jnp.max(jnp.abs(encoded - enc_ref))))
    assert jnp.allclose(action, act_ref, atol=2e-3, rtol=2e-3), (
        float(jnp.max(jnp.abs(action - act_ref))))

    print("KERNEL_OK")
</pallas_src>

<mosaic_0001>
module attributes {stable_mosaic.version = 11 : i64} {
  func.func @_autoencoder_kernel(%arg0: memref<8x32xf32, #tpu.memory_space<vmem>>, %arg1: memref<144x128xbf16, #tpu.memory_space<vmem>>, %arg2: memref<8x128xf32, #tpu.memory_space<vmem>>, %arg3: memref<8x128xf32, #tpu.memory_space<vmem>>, %arg4: memref<8x128xf32, #tpu.memory_space<vmem>>) attributes {dimension_semantics = [], scalar_prefetch = 0 : i64, scratch_operands = 0 : i64, tpu.core_type = #tpu.core_type<tc>} {
    %c0 = arith.constant 0 : index
    %c0_0 = arith.constant 0 : index
    %0 = vector.load %arg0[%c0, %c0_0] : memref<8x32xf32, #tpu.memory_space<vmem>>, vector<8x32xf32>
    %c0_1 = arith.constant 0 : index
    %c0_2 = arith.constant 0 : index
    %1 = vector.load %arg1[%c0_1, %c0_2] : memref<144x128xbf16, #tpu.memory_space<vmem>>, vector<32x128xbf16>
    %c0_3 = arith.constant 0 : index
    %c0_4 = arith.constant 0 : index
    %2 = vector.load %arg2[%c0_3, %c0_4] : memref<8x128xf32, #tpu.memory_space<vmem>>, vector<1x128xf32>
    %3 = arith.truncf %0 : vector<8x32xf32> to vector<8x32xbf16>
    %cst = arith.constant dense<0.000000e+00> : vector<8x128xf32>
    %4 = tpu.matmul %3, %1, %cst {dimension_numbers = #tpu.dot_dimension_numbers<[1], [0], [0], [1], [0, 0, 1, 1], [], []>} : vector<8x32xbf16>, vector<32x128xbf16>, vector<8x128xf32> -> vector<8x128xf32>
    %5 = vector.broadcast %2 : vector<1x128xf32> to vector<8x128xf32>
    %6 = arith.addf %4, %5 : vector<8x128xf32>
    %cst_5 = arith.constant 0.000000e+00 : f32
    %7 = vector.broadcast %cst_5 : f32 to vector<8x128xf32>
    %8 = arith.maximumf %6, %7 : vector<8x128xf32>
    %cst_6 = arith.constant dense<0.000000e+00> : vector<128xf32>
    %9 = vector.multi_reduction <add>, %8, %cst_6 [0] : vector<8x128xf32> to vector<128xf32>
    %10 = vector.shape_cast %9 : vector<128xf32> to vector<1x128xf32>
    %cst_7 = arith.constant 1.250000e-01 : f32
    %11 = vector.broadcast %cst_7 : f32 to vector<1x128xf32>
    %12 = arith.mulf %10, %11 : vector<1x128xf32>
    %13 = vector.broadcast %12 : vector<1x128xf32> to vector<8x128xf32>
    %14 = arith.subf %8, %13 : vector<8x128xf32>
    %15 = arith.mulf %14, %14 : vector<8x128xf32>
    %cst_8 = arith.constant dense<0.000000e+00> : vector<128xf32>
    %16 = vector.multi_reduction <add>, %15, %cst_8 [0] : vector<8x128xf32> to vector<128xf32>
    %17 = vector.shape_cast %16 : vector<128xf32> to vector<1x128xf32>
    %cst_9 = arith.constant 1.250000e-01 : f32
    %18 = vector.broadcast %cst_9 : f32 to vector<1x128xf32>
    %19 = arith.mulf %17, %18 : vector<1x128xf32>
    %cst_10 = arith.constant 9.99999974E-6 : f32
    %20 = vector.broadcast %cst_10 : f32 to vector<1x128xf32>
    %21 = arith.addf %19, %20 : vector<1x128xf32>
    %22 = math.rsqrt %21 : vector<1x128xf32>
    %23 = vector.broadcast %22 : vector<1x128xf32> to vector<8x128xf32>
    %24 = arith.mulf %14, %23 : vector<8x128xf32>
    %c32 = arith.constant 32 : index
    %c0_11 = arith.constant 0 : index
    %25 = vector.load %arg1[%c32, %c0_11] : memref<144x128xbf16, #tpu.memory_space<vmem>>, vector<32x128xbf16>
    %c1 = arith.constant 1 : index
    %c0_12 = arith.constant 0 : index
    %26 = vector.load %arg2[%c1, %c0_12] : memref<8x128xf32, #tpu.memory_space<vmem>>, vector<1x128xf32>
    %27 = vector.extract_strided_slice %24 {offsets = [0, 0], sizes = [8, 32], strides = [1, 1]} : vector<8x128xf32> to vector<8x32xf32>
    %28 = arith.truncf %27 : vector<8x32xf32> to vector<8x32xbf16>
    %cst_13 = arith.constant dense<0.000000e+00> : vector<8x128xf32>
    %29 = tpu.matmul %28, %25, %cst_13 {dimension_numbers = #tpu.dot_dimension_numbers<[1], [0], [0], [1], [0, 0, 1, 1], [], []>} : vector<8x32xbf16>, vector<32x128xbf16>, vector<8x128xf32> -> vector<8x128xf32>
    %30 = vector.broadcast %26 : vector<1x128xf32> to vector<8x128xf32>
    %31 = arith.addf %29, %30 : vector<8x128xf32>
    %cst_14 = arith.constant 0.000000e+00 : f32
    %32 = vector.broadcast %cst_14 : f32 to vector<8x128xf32>
    %33 = arith.maximumf %31, %32 : vector<8x128xf32>
    %cst_15 = arith.constant dense<0.000000e+00> : vector<128xf32>
    %34 = vector.multi_reduction <add>, %33, %cst_15 [0] : vector<8x128xf32> to vector<128xf32>
    %35 = vector.shape_cast %34 : vector<128xf32> to vector<1x128xf32>
    %cst_16 = arith.constant 1.250000e-01 : f32
    %36 = vector.broadcast %cst_16 : f32 to vector<1x128xf32>
    %37 = arith.mulf %35, %36 : vector<1x128xf32>
    %38 = vector.broadcast %37 : vector<1x128xf32> to vector<8x128xf32>
    %39 = arith.subf %33, %38 : vector<8x128xf32>
    %40 = arith.mulf %39, %39 : vector<8x128xf32>
    %cst_17 = arith.constant dense<0.000000e+00> : vector<128xf32>
    %41 = vector.multi_reduction <add>, %40, %cst_17 [0] : vector<8x128xf32> to vector<128xf32>
    %42 = vector.shape_cast %41 : vector<128xf32> to vector<1x128xf32>
    %cst_18 = arith.constant 1.250000e-01 : f32
    %43 = vector.broadcast %cst_18 : f32 to vector<1x128xf32>
    %44 = arith.mulf %42, %43 : vector<1x128xf32>
    %cst_19 = arith.constant 9.99999974E-6 : f32
    %45 = vector.broadcast %cst_19 : f32 to vector<1x128xf32>
    %46 = arith.addf %44, %45 : vector<1x128xf32>
    %47 = math.rsqrt %46 : vector<1x128xf32>
    %48 = vector.broadcast %47 : vector<1x128xf32> to vector<8x128xf32>
    %49 = arith.mulf %39, %48 : vector<8x128xf32>
    %c64 = arith.constant 64 : index
    %c0_20 = arith.constant 0 : index
    %50 = vector.load %arg1[%c64, %c0_20] : memref<144x128xbf16, #tpu.memory_space<vmem>>, vector<16x128xbf16>
    %c2 = arith.constant 2 : index
    %c0_21 = arith.constant 0 : index
    %51 = vector.load %arg2[%c2, %c0_21] : memref<8x128xf32, #tpu.memory_space<vmem>>, vector<1x128xf32>
    %52 = vector.extract_strided_slice %49 {offsets = [0, 0], sizes = [8, 16], strides = [1, 1]} : vector<8x128xf32> to vector<8x16xf32>
    %53 = arith.truncf %52 : vector<8x16xf32> to vector<8x16xbf16>
    %cst_22 = arith.constant dense<0.000000e+00> : vector<8x128xf32>
    %54 = tpu.matmul %53, %50, %cst_22 {dimension_numbers = #tpu.dot_dimension_numbers<[1], [0], [0], [1], [0, 0, 1, 1], [], []>} : vector<8x16xbf16>, vector<16x128xbf16>, vector<8x128xf32> -> vector<8x128xf32>
    %55 = vector.broadcast %51 : vector<1x128xf32> to vector<8x128xf32>
    %56 = arith.addf %54, %55 : vector<8x128xf32>
    %cst_23 = arith.constant 0.000000e+00 : f32
    %57 = vector.broadcast %cst_23 : f32 to vector<8x128xf32>
    %58 = arith.maximumf %56, %57 : vector<8x128xf32>
    %cst_24 = arith.constant dense<0.000000e+00> : vector<128xf32>
    %59 = vector.multi_reduction <add>, %58, %cst_24 [0] : vector<8x128xf32> to vector<128xf32>
    %60 = vector.shape_cast %59 : vector<128xf32> to vector<1x128xf32>
    %cst_25 = arith.constant 1.250000e-01 : f32
    %61 = vector.broadcast %cst_25 : f32 to vector<1x128xf32>
    %62 = arith.mulf %60, %61 : vector<1x128xf32>
    %63 = vector.broadcast %62 : vector<1x128xf32> to vector<8x128xf32>
    %64 = arith.subf %58, %63 : vector<8x128xf32>
    %65 = arith.mulf %64, %64 : vector<8x128xf32>
    %cst_26 = arith.constant dense<0.000000e+00> : vector<128xf32>
    %66 = vector.multi_reduction <add>, %65, %cst_26 [0] : vector<8x128xf32> to vector<128xf32>
    %67 = vector.shape_cast %66 : vector<128xf32> to vector<1x128xf32>
    %cst_27 = arith.constant 1.250000e-01 : f32
    %68 = vector.broadcast %cst_27 : f32 to vector<1x128xf32>
    %69 = arith.mulf %67, %68 : vector<1x128xf32>
    %cst_28 = arith.constant 9.99999974E-6 : f32
    %70 = vector.broadcast %cst_28 : f32 to vector<1x128xf32>
    %71 = arith.addf %69, %70 : vector<1x128xf32>
    %72 = math.rsqrt %71 : vector<1x128xf32>
    %73 = vector.broadcast %72 : vector<1x128xf32> to vector<8x128xf32>
    %74 = arith.mulf %64, %73 : vector<8x128xf32>
    %c80 = arith.constant 80 : index
    %c0_29 = arith.constant 0 : index
    %75 = vector.load %arg1[%c80, %c0_29] : memref<144x128xbf16, #tpu.memory_space<vmem>>, vector<16x128xbf16>
    %c3 = arith.constant 3 : index
    %c0_30 = arith.constant 0 : index
    %76 = vector.load %arg2[%c3, %c0_30] : memref<8x128xf32, #tpu.memory_space<vmem>>, vector<1x128xf32>
    %77 = vector.extract_strided_slice %74 {offsets = [0, 0], sizes = [8, 16], strides = [1, 1]} : vector<8x128xf32> to vector<8x16xf32>
    %78 = arith.truncf %77 : vector<8x16xf32> to vector<8x16xbf16>
    %cst_31 = arith.constant dense<0.000000e+00> : vector<8x128xf32>
    %79 = tpu.matmul %78, %75, %cst_31 {dimension_numbers = #tpu.dot_dimension_numbers<[1], [0], [0], [1], [0, 0, 1, 1], [], []>} : vector<8x16xbf16>, vector<16x128xbf16>, vector<8x128xf32> -> vector<8x128xf32>
    %80 = vector.broadcast %76 : vector<1x128xf32> to vector<8x128xf32>
    %81 = arith.addf %79, %80 : vector<8x128xf32>
    %c0_32 = arith.constant 0 : index
    %c0_33 = arith.constant 0 : index
    %82 = vector.load %arg3[%c0_32, %c0_33] : memref<8x128xf32, #tpu.memory_space<vmem>>, vector<8x128xf32>
    tpu.vector_store %arg3[%c0_32, %c0_33], %81 {strides = array<i32>} : memref<8x128xf32, #tpu.memory_space<vmem>>, vector<8x128xf32>,
    %c96 = arith.constant 96 : index
    %c0_34 = arith.constant 0 : index
    %83 = vector.load %arg1[%c96, %c0_34] : memref<144x128xbf16, #tpu.memory_space<vmem>>, vector<16x128xbf16>
    %c4 = arith.constant 4 : index
    %c0_35 = arith.constant 0 : index
    %84 = vector.load %arg2[%c4, %c0_35] : memref<8x128xf32, #tpu.memory_space<vmem>>, vector<1x128xf32>
    %85 = vector.extract_strided_slice %81 {offsets = [0, 0], sizes = [8, 16], strides = [1, 1]} : vector<8x128xf32> to vector<8x16xf32>
    %86 = arith.truncf %85 : vector<8x16xf32> to vector<8x16xbf16>
    %cst_36 = arith.constant dense<0.000000e+00> : vector<8x128xf32>
    %87 = tpu.matmul %86, %83, %cst_36 {dimension_numbers = #tpu.dot_dimension_numbers<[1], [0], [0], [1], [0, 0, 1, 1], [], []>} : vector<8x16xbf16>, vector<16x128xbf16>, vector<8x128xf32> -> vector<8x128xf32>
    %88 = vector.broadcast %84 : vector<1x128xf32> to vector<8x128xf32>
    %89 = arith.addf %87, %88 : vector<8x128xf32>
    %cst_37 = arith.constant 0.000000e+00 : f32
    %90 = vector.broadcast %cst_37 : f32 to vector<8x128xf32>
    %91 = arith.maximumf %89, %90 : vector<8x128xf32>
    %cst_38 = arith.constant dense<0.000000e+00> : vector<128xf32>
    %92 = vector.multi_reduction <add>, %91, %cst_38 [0] : vector<8x128xf32> to vector<128xf32>
    %93 = vector.shape_cast %92 : vector<128xf32> to vector<1x128xf32>
    %cst_39 = arith.constant 1.250000e-01 : f32
    %94 = vector.broadcast %cst_39 : f32 to vector<1x128xf32>
    %95 = arith.mulf %93, %94 : vector<1x128xf32>
    %96 = vector.broadcast %95 : vector<1x128xf32> to vector<8x128xf32>
    %97 = arith.subf %91, %96 : vector<8x128xf32>
    %98 = arith.mulf %97, %97 : vector<8x128xf32>
    %cst_40 = arith.constant dense<0.000000e+00> : vector<128xf32>
    %99 = vector.multi_reduction <add>, %98, %cst_40 [0] : vector<8x128xf32> to vector<128xf32>
    %100 = vector.shape_cast %99 : vector<128xf32> to vector<1x128xf32>
    %cst_41 = arith.constant 1.250000e-01 : f32
    %101 = vector.broadcast %cst_41 : f32 to vector<1x128xf32>
    %102 = arith.mulf %100, %101 : vector<1x128xf32>
    %cst_42 = arith.constant 9.99999974E-6 : f32
    %103 = vector.broadcast %cst_42 : f32 to vector<1x128xf32>
    %104 = arith.addf %102, %103 : vector<1x128xf32>
    %105 = math.rsqrt %104 : vector<1x128xf32>
    %106 = vector.broadcast %105 : vector<1x128xf32> to vector<8x128xf32>
    %107 = arith.mulf %97, %106 : vector<8x128xf32>
    %c112 = arith.constant 112 : index
    %c0_43 = arith.constant 0 : index
    %108 = vector.load %arg1[%c112, %c0_43] : memref<144x128xbf16, #tpu.memory_space<vmem>>, vector<32x128xbf16>
    %c5 = arith.constant 5 : index
    %c0_44 = arith.constant 0 : index
    %109 = vector.load %arg2[%c5, %c0_44] : memref<8x128xf32, #tpu.memory_space<vmem>>, vector<1x128xf32>
    %110 = vector.extract_strided_slice %107 {offsets = [0, 0], sizes = [8, 32], strides = [1, 1]} : vector<8x128xf32> to vector<8x32xf32>
    %111 = arith.truncf %110 : vector<8x32xf32> to vector<8x32xbf16>
    %cst_45 = arith.constant dense<0.000000e+00> : vector<8x128xf32>
    %112 = tpu.matmul %111, %108, %cst_45 {dimension_numbers = #tpu.dot_dimension_numbers<[1], [0], [0], [1], [0, 0, 1, 1], [], []>} : vector<8x32xbf16>, vector<32x128xbf16>, vector<8x128xf32> -> vector<8x128xf32>
    %113 = vector.broadcast %109 : vector<1x128xf32> to vector<8x128xf32>
    %114 = arith.addf %112, %113 : vector<8x128xf32>
    %c0_46 = arith.constant 0 : index
    %c0_47 = arith.constant 0 : index
    %115 = vector.load %arg4[%c0_46, %c0_47] : memref<8x128xf32, #tpu.memory_space<vmem>>, vector<8x128xf32>
    tpu.vector_store %arg4[%c0_46, %c0_47], %114 {strides = array<i32>} : memref<8x128xf32, #tpu.memory_space<vmem>>, vector<8x128xf32>,
    return
  }
}

</mosaic_0001>

<llo_original>
// kernel: _autoencoder_forward_impl.1
$region0: #{_autoencoder_forward_impl.1}
  #allocation0 [shape = 'u32[]', space=smem, size = 0x4, offset = 0x4, fixed_abs, tag = 'smem constant byte address 0x4 - core index']
  #allocation1 [shape = 'u32[144,128]{1,0:T(1,128)}', space=vmem, size = 0x12000, scoped, tag = 'internal scratch']
  %s0 = inlined_call_operand.hbm [shape: f32[8,32], index: 0, kind: input, shape index: {}]
  %s1 = inlined_call_operand.hbm [shape: bf16[144,128], index: 1, kind: input, shape index: {}]
  %s2 = inlined_call_operand.hbm [shape: f32[8,128], index: 2, kind: input, shape index: {}]
  %s3 = inlined_call_operand.hbm [shape: f32[8,128], index: 3, kind: output, shape index: {0}]
  %s4 = inlined_call_operand.vmem [shape: f32[8,128], index: 4, kind: output, shape index: {1}]
  %5 = xla_tuple %s3, %s4
  %s6 = sld [smem:[#allocation0]]
  $region42: #{_autoencoder_forward_impl.1} parent=0
    _
  %s8 = ssub.s32 1, %s6
  %s9 = scalar_select 0, %s8, %s6
  $region1: #{_autoencoder_forward_impl.1} parent=0
    #allocation2 [shape = 'u8[4096]{0}', space=vmem, size = 0x1000, scoped, tag = 'input window, operand 0, single buffered']
    #allocation3 [shape = 's32[1]{0}', space=sflag, size = 0x4, scoped, tag = 'scoped memory for _autoencoder_forward_impl.1']
    #allocation4 [shape = 's32[1]{0}', space=sflag, size = 0x4, scoped, tag = 'scoped memory for _autoencoder_forward_impl.1']
    #allocation5 [shape = 'u8[36864]{0}', space=vmem, size = 0x9000, scoped, tag = 'input window, operand 1, single buffered']
    #allocation6 [shape = 's32[1]{0}', space=sflag, size = 0x4, scoped, tag = 'scoped memory for _autoencoder_forward_impl.1']
    #allocation7 [shape = 'u8[4096]{0}', space=vmem, size = 0x1000, scoped, tag = 'input window, operand 2, single buffered']
    #allocation8 [shape = 'u8[4096]{0}', space=vmem, size = 0x1000, scoped, tag = 'output window, operand 0, single buffered']
    %10 = vsyncpa [#allocation3], 0
    %11 = vsyncpa [#allocation6], 0
    %12 = vsyncpa [#allocation4], 0
    // Predicated region
    $region2: #{_autoencoder_forward_impl.1} parent=1 // pred_check
      _
    $region3: #{_autoencoder_forward_impl.1} parent=1 // pred_check_branch
      %14 = sbr.rel (0) target = $region5
    $region4: #{_autoencoder_forward_impl.1} parent=1 // pred_region
      %s16 = ssub.s32 128, 128
      %17 = vsyncadd [#allocation3], %s16
      %s19 = sshll.u32 [#allocation2], 4
      %s20 = int_to_ptr.vmem [resolvable:$true] %s19
      %22 = dma.hbm_to_vmem [thread:$0]  %s0, 128, %s20, [#allocation3]
    $region5: #{_autoencoder_forward_impl.1} parent=1 // pred_fallthru
      _
    // Predicated region
    $region6: #{_autoencoder_forward_impl.1} parent=1 // pred_check
      _
    $region7: #{_autoencoder_forward_impl.1} parent=1 // pred_check_branch
      %24 = sbr.rel (0) target = $region9
    $region8: #{_autoencoder_forward_impl.1} parent=1 // pred_region
      %s26 = ssub.s32 1152, 1152
      %27 = vsyncadd [#allocation6], %s26
      %s28 = sshll.u32 [#allocation5], 4
      %s29 = int_to_ptr.vmem [resolvable:$true] %s28
      %34 = dma.hbm_to_vmem [thread:$0]  %s1, 1152, %s29, [#allocation6], 64, 64, 4
    $region9: #{_autoencoder_forward_impl.1} parent=1 // pred_fallthru
      _
    // Predicated region
    $region10: #{_autoencoder_forward_impl.1} parent=1 // pred_check
      _
    $region11: #{_autoencoder_forward_impl.1} parent=1 // pred_check_branch
      %36 = sbr.rel (0) target = $region13
    $region12: #{_autoencoder_forward_impl.1} parent=1 // pred_region
      %s38 = ssub.s32 128, 128
      %39 = vsyncadd [#allocation6], %s38
      %s41 = sshll.u32 [#allocation7], 4
      %s42 = int_to_ptr.vmem [resolvable:$true] %s41
      %44 = dma.hbm_to_vmem [thread:$0]  %s2, 128, %s42, [#allocation6]
    $region13: #{_autoencoder_forward_impl.1} parent=1 // pred_fallthru
      _
    // Predicated region
    $region14: #{_autoencoder_forward_impl.1} parent=1 // pred_check
      _
    $region15: #{_autoencoder_forward_impl.1} parent=1 // pred_check_branch
      %46 = sbr.rel (0) target = $region17
    $region16: #{_autoencoder_forward_impl.1} parent=1 // pred_region
      %47 = dma.done [#allocation3], 128
    $region17: #{_autoencoder_forward_impl.1} parent=1 // pred_fallthru
      _
    // Predicated region
    $region18: #{_autoencoder_forward_impl.1} parent=1 // pred_check
      _
    $region19: #{_autoencoder_forward_impl.1} parent=1 // pred_check_branch
      %49 = sbr.rel (0) target = $region21
    $region20: #{_autoencoder_forward_impl.1} parent=1 // pred_region
      %50 = dma.done [#allocation6], 1152
    $region21: #{_autoencoder_forward_impl.1} parent=1 // pred_fallthru
      _
    // Predicated region
    $region22: #{_autoencoder_forward_impl.1} parent=1 // pred_check
      _
    $region23: #{_autoencoder_forward_impl.1} parent=1 // pred_check_branch
      %52 = sbr.rel (0) target = $region25
    $region24: #{_autoencoder_forward_impl.1} parent=1 // pred_region
      %53 = dma.done [#allocation6], 128
    $region25: #{_autoencoder_forward_impl.1} parent=1 // pred_fallthru
      _
    %v55 = vld [vmem:[#allocation2] sm:$0xff]
    %v56 = vld [vmem:[#allocation5] sm:$0xf]
    %v57 = vld [vmem:[#allocation5 + $0x4] sm:$0xf]
    %v58 = vld [vmem:[#allocation5 + $0x8] sm:$0xf]
    %v59 = vld [vmem:[#allocation5 + $0xc] sm:$0xf]
    %v60 = vld [vmem:[#allocation7] sm:$0x1]
    %v61 = vpack.c.bf16 %v55, %v55
    %v62 = vlaneseq
    %v63 = vshrl.u32 %v62, 7
    %v64 = vsub.s32 0, %v63
    %v65 = vrot.slane %v60, %v64
    %v70 = vunpack.c.l.b16 %v56
    %v71 = vunpack.c.l.b16 %v57
    %v72 = vunpack.c.l.b16 %v58
    %v73 = vunpack.c.l.b16 %v59
    %v74 = vpack.c.b16 %v71, %v70
    %v75 = vpack.c.b16 %v73, %v72
    %vm78 = vcmask 261120
    %v80 = vsel %vm78, %v61, 0
    %82 = vmatprep.subr.bf16.mxu0 0
    %83 = vmatpush1.bf16.msra.mxu0 0
    %84 = vmatprep.subr.bf16.mxu0 0
    %85 = vmatpush1.bf16.msra.mxu0 0
    %86 = vmatprep.subr.bf16.mxu0 0
    %87 = vmatpush1.bf16.msra.mxu0 0
    %88 = vmatprep.subr.bf16.mxu0 0
    %89 = vmatpush1.bf16.msra.mxu0 0
    %90 = vmatprep.subr.bf16.mxu0 0
    %91 = vmatpush1.bf16.msra.mxu0 0
    %92 = vmatprep.subr.bf16.mxu0 0
    %93 = vmatpush1.bf16.msra.mxu0 0
    %94 = vmatprep.subr.bf16.mxu0 0
    %95 = vmatpush1.bf16.msra.mxu0 %v75
    %96 = vmatprep.subr.bf16.mxu0 0
    %97 = vmatpush1.bf16.msra.mxu0 %v74
    %98 = vmatprep.subr.bf16.mxu0 0
    %99 = vmatpush2.bf16.msra.mxu0 0
    %100 = vmatprep.subr.bf16.mxu0 0
    %101 = vmatpush2.bf16.msra.mxu0 0
    %102 = vmatprep.subr.bf16.mxu0 0
    %103 = vmatpush2.bf16.msra.mxu0 0
    %104 = vmatprep.subr.bf16.mxu0 0
    %105 = vmatpush2.bf16.msra.mxu0 0
    %106 = vmatprep.subr.bf16.mxu0 0
    %107 = vmatpush2.bf16.msra.mxu0 0
    %108 = vmatprep.subr.bf16.mxu0 0
    %109 = vmatpush2.bf16.msra.mxu0 0
    %110 = vmatprep.subr.bf16.mxu0 0
    %111 = vmatpush2.bf16.msra.mxu0 0
    %112 = vmatprep.subr.bf16.mxu0 0
    %113 = vmatpush2.bf16.msra.mxu0 0
    %114 = vmatprep.mubr.bf16.mxu0 0
    %115 = vmatmul.mubr.bf16.gmra.mxu0 %v80
    %v116 = vpop.f32.mrf.mxu0
    %v117 = vadd.f32 %v65, %v116
    %v118 = vpop.f32.mrf.mxu0
    %v119 = vpop.f32.mrf.mxu0
    %v120 = vpop.f32.mrf.mxu0
    %121 = vdwg.mxu0
    %v122 = vmax.f32 %v117, 0.0
    %v123 = vrot.slane %v122, 4
    %v124 = vadd.f32 %v122, %v123
    %v125 = vrot.slane %v124, 2
    %v126 = vadd.f32 %v124, %v125
    %v127 = vrot.slane %v126, 1
    %v128 = vadd.f32 %v126, %v127
    %v129 = vmul.f32 %v128, 0.125
    %v130 = vsub.f32 %v122, %v129
    %v131 = vmul.f32 %v130, %v130
    %v132 = vrot.slane %v131, 4
    %v133 = vadd.f32 %v131, %v132
    %v134 = vrot.slane %v133, 2
    %v135 = vadd.f32 %v133, %v134
    %v136 = vrot.slane %v135, 1
    %v137 = vadd.f32 %v135, %v136
    %v138 = vmul.f32 %v137, 0.125
    %v139 = vadd.f32 %v138, 1e-05
    %v140 = vrsqrt.pop %v139
    %v141 = vmul.f32 %v130, %v140
    %v142 = vld [vmem:[#allocation5 + $0x10] sm:$0xf]
    %v143 = vld [vmem:[#allocation5 + $0x14] sm:$0xf]
    %v144 = vld [vmem:[#allocation5 + $0x18] sm:$0xf]
    %v145 = vld [vmem:[#allocation5 + $0x1c] sm:$0xf]
    %v146 = vld [vmem:[#allocation7 + $0x1] sm:$0x1]
    %v147 = vpack.c.bf16 %v141, %v141
    %v148 = vlaneseq
    %v149 = vshrl.u32 %v148, 7
    %v150 = vsub.s32 0, %v149
    %v151 = vrot.slane %v146, %v150
    %v156 = vunpack.c.l.b16 %v142
    %v157 = vunpack.c.l.b16 %v143
    %v158 = vunpack.c.l.b16 %v144
    %v159 = vunpack.c.l.b16 %v145
    %v160 = vpack.c.b16 %v157, %v156
    %v161 = vpack.c.b16 %v159, %v158
    %v165 = vsel %vm78, %v147, 0
    %167 = vmatprep.subr.bf16.mxu0 0
    %168 = vmatpush1.bf16.msra.mxu0 0
    %169 = vmatprep.subr.bf16.mxu0 0
    %170 = vmatpush1.bf16.msra.mxu0 0
    %171 = vmatprep.subr.bf16.mxu0 0
    %172 = vmatpush1.bf16.msra.mxu0 0
    %173 = vmatprep.subr.bf16.mxu0 0
    %174 = vmatpush1.bf16.msra.mxu0 0
    %175 = vmatprep.subr.bf16.mxu0 0
    %176 = vmatpush1.bf16.msra.mxu0 0
    %177 = vmatprep.subr.bf16.mxu0 0
    %178 = vmatpush1.bf16.msra.mxu0 0
    %179 = vmatprep.subr.bf16.mxu0 0
    %180 = vmatpush1.bf16.msra.mxu0 %v161
    %181 = vmatprep.subr.bf16.mxu0 0
    %182 = vmatpush1.bf16.msra.mxu0 %v160
    %183 = vmatprep.subr.bf16.mxu0 0
    %184 = vmatpush2.bf16.msra.mxu0 0
    %185 = vmatprep.subr.bf16.mxu0 0
    %186 = vmatpush2.bf16.msra.mxu0 0
    %187 = vmatprep.subr.bf16.mxu0 0
    %188 = vmatpush2.bf16.msra.mxu0 0
    %189 = vmatprep.subr.bf16.mxu0 0
    %190 = vmatpush2.bf16.msra.mxu0 0
    %191 = vmatprep.subr.bf16.mxu0 0
    %192 = vmatpush2.bf16.msra.mxu0 0
    %193 = vmatprep.subr.bf16.mxu0 0
    %194 = vmatpush2.bf16.msra.mxu0 0
    %195 = vmatprep.subr.bf16.mxu0 0
    %196 = vmatpush2.bf16.msra.mxu0 0
    %197 = vmatprep.subr.bf16.mxu0 0
    %198 = vmatpush2.bf16.msra.mxu0 0
    %199 = vmatprep.mubr.bf16.mxu0 0
    %200 = vmatmul.mubr.bf16.gmra.mxu0 %v165
    %v201 = vpop.f32.mrf.mxu0
    %v202 = vadd.f32 %v151, %v201
    %v203 = vpop.f32.mrf.mxu0
    %v204 = vpop.f32.mrf.mxu0
    %v205 = vpop.f32.mrf.mxu0
    %206 = vdwg.mxu0
    %v207 = vmax.f32 %v202, 0.0
    %v208 = vrot.slane %v207, 4
    %v209 = vadd.f32 %v207, %v208
    %v210 = vrot.slane %v209, 2
    %v211 = vadd.f32 %v209, %v210
    %v212 = vrot.slane %v211, 1
    %v213 = vadd.f32 %v211, %v212
    %v214 = vmul.f32 %v213, 0.125
    %v215 = vsub.f32 %v207, %v214
    %v216 = vmul.f32 %v215, %v215
    %v217 = vrot.slane %v216, 4
    %v218 = vadd.f32 %v216, %v217
    %v219 = vrot.slane %v218, 2
    %v220 = vadd.f32 %v218, %v219
    %v221 = vrot.slane %v220, 1
    %v222 = vadd.f32 %v220, %v221
    %v223 = vmul.f32 %v222, 0.125
    %v224 = vadd.f32 %v223, 1e-05
    %v225 = vrsqrt.pop %v224
    %v226 = vmul.f32 %v215, %v225
    %v227 = vld [vmem:[#allocation5 + $0x20] sm:$0xf]
    %v228 = vld [vmem:[#allocation5 + $0x24] sm:$0xf]
    %v229 = vld [vmem:[#allocation7 + $0x2] sm:$0x1]
    %v230 = vpack.c.bf16 %v226, %v226
    %v231 = vlaneseq
    %v232 = vshrl.u32 %v231, 7
    %v233 = vsub.s32 0, %v232
    %v234 = vrot.slane %v229, %v233
    %v237 = vunpack.c.l.b16 %v227
    %v238 = vunpack.c.l.b16 %v228
    %v239 = vpack.c.b16 %v238, %v237
    %vm241 = vcmask 130048
    %v243 = vsel %vm241, %v230, 0
    %245 = vmatprep.subr.bf16.mxu0 0
    %246 = vmatpush1.bf16.msra.mxu0 0
    %247 = vmatprep.subr.bf16.mxu0 0
    %248 = vmatpush1.bf16.msra.mxu0 0
    %249 = vmatprep.subr.bf16.mxu0 0
    %250 = vmatpush1.bf16.msra.mxu0 0
    %251 = vmatprep.subr.bf16.mxu0 0
    %252 = vmatpush1.bf16.msra.mxu0 0
    %253 = vmatprep.subr.bf16.mxu0 0
    %254 = vmatpush1.bf16.msra.mxu0 0
    %255 = vmatprep.subr.bf16.mxu0 0
    %256 = vmatpush1.bf16.msra.mxu0 0
    %257 = vmatprep.subr.bf16.mxu0 0
    %258 = vmatpush1.bf16.msra.mxu0 0
    %259 = vmatprep.subr.bf16.mxu0 0
    %260 = vmatpush1.bf16.msra.mxu0 %v239
    %261 = vmatprep.subr.bf16.mxu0 0
    %262 = vmatpush2.bf16.msra.mxu0 0
    %263 = vmatprep.subr.bf16.mxu0 0
    %264 = vmatpush2.bf16.msra.mxu0 0
    %265 = vmatprep.subr.bf16.mxu0 0
    %266 = vmatpush2.bf16.msra.mxu0 0
    %267 = vmatprep.subr.bf16.mxu0 0
    %268 = vmatpush2.bf16.msra.mxu0 0
    %269 = vmatprep.subr.bf16.mxu0 0
    %270 = vmatpush2.bf16.msra.mxu0 0
    %271 = vmatprep.subr.bf16.mxu0 0
    %272 = vmatpush2.bf16.msra.mxu0 0
    %273 = vmatprep.subr.bf16.mxu0 0
    %274 = vmatpush2.bf16.msra.mxu0 0
    %275 = vmatprep.subr.bf16.mxu0 0
    %276 = vmatpush2.bf16.msra.mxu0 0
    %277 = vmatprep.mubr.bf16.mxu0 0
    %278 = vmatmul.mubr.bf16.gmra.mxu0 %v243
    %v279 = vpop.f32.mrf.mxu0
    %v280 = vadd.f32 %v234, %v279
    %v281 = vpop.f32.mrf.mxu0
    %v282 = vpop.f32.mrf.mxu0
    %v283 = vpop.f32.mrf.mxu0
    %284 = vdwg.mxu0
    %v285 = vmax.f32 %v280, 0.0
    %v286 = vrot.slane %v285, 4
    %v287 = vadd.f32 %v285, %v286
    %v288 = vrot.slane %v287, 2
    %v289 = vadd.f32 %v287, %v288
    %v290 = vrot.slane %v289, 1
    %v291 = vadd.f32 %v289, %v290
    %v292 = vmul.f32 %v291, 0.125
    %v293 = vsub.f32 %v285, %v292
    %v294 = vmul.f32 %v293, %v293
    %v295 = vrot.slane %v294, 4
    %v296 = vadd.f32 %v294, %v295
    %v297 = vrot.slane %v296, 2
    %v298 = vadd.f32 %v296, %v297
    %v299 = vrot.slane %v298, 1
    %v300 = vadd.f32 %v298, %v299
    %v301 = vmul.f32 %v300, 0.125
    %v302 = vadd.f32 %v301, 1e-05
    %v303 = vrsqrt.pop %v302
    %v304 = vmul.f32 %v293, %v303
    %v305 = vld [vmem:[#allocation5 + $0x28] sm:$0xf]
    %v306 = vld [vmem:[#allocation5 + $0x2c] sm:$0xf]
    %v307 = vld [vmem:[#allocation7 + $0x3] sm:$0x1]
    %v308 = vpack.c.bf16 %v304, %v304
    %v309 = vlaneseq
    %v310 = vshrl.u32 %v309, 7
    %v311 = vsub.s32 0, %v310
    %v312 = vrot.slane %v307, %v311
    %v315 = vunpack.c.l.b16 %v305
    %v316 = vunpack.c.l.b16 %v306
    %v317 = vpack.c.b16 %v316, %v315
    %v320 = vsel %vm241, %v308, 0
    %322 = vmatprep.subr.bf16.mxu0 0
    %323 = vmatpush1.bf16.msra.mxu0 0
    %324 = vmatprep.subr.bf16.mxu0 0
    %325 = vmatpush1.bf16.msra.mxu0 0
    %326 = vmatprep.subr.bf16.mxu0 0
    %327 = vmatpush1.bf16.msra.mxu0 0
    %328 = vmatprep.subr.bf16.mxu0 0
    %329 = vmatpush1.bf16.msra.mxu0 0
    %330 = vmatprep.subr.bf16.mxu0 0
    %331 = vmatpush1.bf16.msra.mxu0 0
    %332 = vmatprep.subr.bf16.mxu0 0
    %333 = vmatpush1.bf16.msra.mxu0 0
    %334 = vmatprep.subr.bf16.mxu0 0
    %335 = vmatpush1.bf16.msra.mxu0 0
    %336 = vmatprep.subr.bf16.mxu0 0
    %337 = vmatpush1.bf16.msra.mxu0 %v317
    %338 = vmatprep.subr.bf16.mxu0 0
    %339 = vmatpush2.bf16.msra.mxu0 0
    %340 = vmatprep.subr.bf16.mxu0 0
    %341 = vmatpush2.bf16.msra.mxu0 0
    %342 = vmatprep.subr.bf16.mxu0 0
    %343 = vmatpush2.bf16.msra.mxu0 0
    %344 = vmatprep.subr.bf16.mxu0 0
    %345 = vmatpush2.bf16.msra.mxu0 0
    %346 = vmatprep.subr.bf16.mxu0 0
    %347 = vmatpush2.bf16.msra.mxu0 0
    %348 = vmatprep.subr.bf16.mxu0 0
    %349 = vmatpush2.bf16.msra.mxu0 0
    %350 = vmatprep.subr.bf16.mxu0 0
    %351 = vmatpush2.bf16.msra.mxu0 0
    %352 = vmatprep.subr.bf16.mxu0 0
    %353 = vmatpush2.bf16.msra.mxu0 0
    %354 = vmatprep.mubr.bf16.mxu0 0
    %355 = vmatmul.mubr.bf16.gmra.mxu0 %v320
    %v356 = vpop.f32.mrf.mxu0
    %v357 = vadd.f32 %v312, %v356
    %v358 = vpop.f32.mrf.mxu0
    %v359 = vpop.f32.mrf.mxu0
    %v360 = vpop.f32.mrf.mxu0
    %361 = vdwg.mxu0
    %362 = vst [vmem:[#allocation8] sm:$0xff] %v357
    %v363 = vld [vmem:[#allocation5 + $0x30] sm:$0xf]
    %v364 = vld [vmem:[#allocation5 + $0x34] sm:$0xf]
    %v365 = vld [vmem:[#allocation7 + $0x4] sm:$0x1]
    %v366 = vpack.c.bf16 %v357, %v357
    %v367 = vlaneseq
    %v368 = vshrl.u32 %v367, 7
    %v369 = vsub.s32 0, %v368
    %v370 = vrot.slane %v365, %v369
    %v373 = vunpack.c.l.b16 %v363
    %v374 = vunpack.c.l.b16 %v364
    %v375 = vpack.c.b16 %v374, %v373
    %v378 = vsel %vm241, %v366, 0
    %380 = vmatprep.subr.bf16.mxu0 0
    %381 = vmatpush1.bf16.msra.mxu0 0
    %382 = vmatprep.subr.bf16.mxu0 0
    %383 = vmatpush1.bf16.msra.mxu0 0
    %384 = vmatprep.subr.bf16.mxu0 0
    %385 = vmatpush1.bf16.msra.mxu0 0
    %386 = vmatprep.subr.bf16.mxu0 0
    %387 = vmatpush1.bf16.msra.mxu0 0
    %388 = vmatprep.subr.bf16.mxu0 0
    %389 = vmatpush1.bf16.msra.mxu0 0
    %390 = vmatprep.subr.bf16.mxu0 0
    %391 = vmatpush1.bf16.msra.mxu0 0
    %392 = vmatprep.subr.bf16.mxu0 0
    %393 = vmatpush1.bf16.msra.mxu0 0
    %394 = vmatprep.subr.bf16.mxu0 0
    %395 = vmatpush1.bf16.msra.mxu0 %v375
    %396 = vmatprep.subr.bf16.mxu0 0
    %397 = vmatpush2.bf16.msra.mxu0 0
    %398 = vmatprep.subr.bf16.mxu0 0
    %399 = vmatpush2.bf16.msra.mxu0 0
    %400 = vmatprep.subr.bf16.mxu0 0
    %401 = vmatpush2.bf16.msra.mxu0 0
    %402 = vmatprep.subr.bf16.mxu0 0
    %403 = vmatpush2.bf16.msra.mxu0 0
    %404 = vmatprep.subr.bf16.mxu0 0
    %405 = vmatpush2.bf16.msra.mxu0 0
    %406 = vmatprep.subr.bf16.mxu0 0
    %407 = vmatpush2.bf16.msra.mxu0 0
    %408 = vmatprep.subr.bf16.mxu0 0
    %409 = vmatpush2.bf16.msra.mxu0 0
    %410 = vmatprep.subr.bf16.mxu0 0
    %411 = vmatpush2.bf16.msra.mxu0 0
    %412 = vmatprep.mubr.bf16.mxu0 0
    %413 = vmatmul.mubr.bf16.gmra.mxu0 %v378
    %v414 = vpop.f32.mrf.mxu0
    %v415 = vadd.f32 %v370, %v414
    %v416 = vpop.f32.mrf.mxu0
    %v417 = vpop.f32.mrf.mxu0
    %v418 = vpop.f32.mrf.mxu0
    %419 = vdwg.mxu0
    %v420 = vmax.f32 %v415, 0.0
    %v421 = vrot.slane %v420, 4
    %v422 = vadd.f32 %v420, %v421
    %v423 = vrot.slane %v422, 2
    %v424 = vadd.f32 %v422, %v423
    %v425 = vrot.slane %v424, 1
    %v426 = vadd.f32 %v424, %v425
    %v427 = vmul.f32 %v426, 0.125
    %v428 = vsub.f32 %v420, %v427
    %v429 = vmul.f32 %v428, %v428
    %v430 = vrot.slane %v429, 4
    %v431 = vadd.f32 %v429, %v430
    %v432 = vrot.slane %v431, 2
    %v433 = vadd.f32 %v431, %v432
    %v434 = vrot.slane %v433, 1
    %v435 = vadd.f32 %v433, %v434
    %v436 = vmul.f32 %v435, 0.125
    %v437 = vadd.f32 %v436, 1e-05
    %v438 = vrsqrt.pop %v437
    %v439 = vmul.f32 %v428, %v438
    %v440 = vld [vmem:[#allocation5 + $0x38] sm:$0xf]
    %v441 = vld [vmem:[#allocation5 + $0x3c] sm:$0xf]
    %v442 = vld [vmem:[#allocation5 + $0x40] sm:$0xf]
    %v443 = vld [vmem:[#allocation5 + $0x44] sm:$0xf]
    %v444 = vld [vmem:[#allocation7 + $0x5] sm:$0x1]
    %v445 = vpack.c.bf16 %v439, %v439
    %v446 = vlaneseq
    %v447 = vshrl.u32 %v446, 7
    %v448 = vsub.s32 0, %v447
    %v449 = vrot.slane %v444, %v448
    %v454 = vunpack.c.l.b16 %v440
    %v455 = vunpack.c.l.b16 %v441
    %v456 = vunpack.c.l.b16 %v442
    %v457 = vunpack.c.l.b16 %v443
    %v458 = vpack.c.b16 %v455, %v454
    %v459 = vpack.c.b16 %v457, %v456
    %v463 = vsel %vm78, %v445, 0
    %465 = vmatprep.subr.bf16.mxu0 0
    %466 = vmatpush1.bf16.msra.mxu0 0
    %467 = vmatprep.subr.bf16.mxu0 0
    %468 = vmatpush1.bf16.msra.mxu0 0
    %469 = vmatprep.subr.bf16.mxu0 0
    %470 = vmatpush1.bf16.msra.mxu0 0
    %471 = vmatprep.subr.bf16.mxu0 0
    %472 = vmatpush1.bf16.msra.mxu0 0
    %473 = vmatprep.subr.bf16.mxu0 0
    %474 = vmatpush1.bf16.msra.mxu0 0
    %475 = vmatprep.subr.bf16.mxu0 0
    %476 = vmatpush1.bf16.msra.mxu0 0
    %477 = vmatprep.subr.bf16.mxu0 0
    %478 = vmatpush1.bf16.msra.mxu0 %v459
    %479 = vmatprep.subr.bf16.mxu0 0
    %480 = vmatpush1.bf16.msra.mxu0 %v458
    %481 = vmatprep.subr.bf16.mxu0 0
    %482 = vmatpush2.bf16.msra.mxu0 0
    %483 = vmatprep.subr.bf16.mxu0 0
    %484 = vmatpush2.bf16.msra.mxu0 0
    %485 = vmatprep.subr.bf16.mxu0 0
    %486 = vmatpush2.bf16.msra.mxu0 0
    %487 = vmatprep.subr.bf16.mxu0 0
    %488 = vmatpush2.bf16.msra.mxu0 0
    %489 = vmatprep.subr.bf16.mxu0 0
    %490 = vmatpush2.bf16.msra.mxu0 0
    %491 = vmatprep.subr.bf16.mxu0 0
    %492 = vmatpush2.bf16.msra.mxu0 0
    %493 = vmatprep.subr.bf16.mxu0 0
    %494 = vmatpush2.bf16.msra.mxu0 0
    %495 = vmatprep.subr.bf16.mxu0 0
    %496 = vmatpush2.bf16.msra.mxu0 0
    %497 = vmatprep.mubr.bf16.mxu0 0
    %498 = vmatmul.mubr.bf16.gmra.mxu0 %v463
    %v499 = vpop.f32.mrf.mxu0
    %v500 = vadd.f32 %v449, %v499
    %v501 = vpop.f32.mrf.mxu0
    %v502 = vpop.f32.mrf.mxu0
    %v503 = vpop.f32.mrf.mxu0
    %504 = vdwg.mxu0
    %505 = vst [vmem:[%s4] sm:$0xff] %v500
    // Predicated region
    $region26: #{_autoencoder_forward_impl.1} parent=1 // pred_check
      _
    $region27: #{_autoencoder_forward_impl.1} parent=1 // pred_check_branch
      %507 = sbr.rel (0) target = $region29
    $region28: #{_autoencoder_forward_impl.1} parent=1 // pred_region
      %s509 = ssub.s32 128, 128
      %510 = vsyncadd [#allocation4], %s509
      %s512 = sshll.u32 [#allocation8], 4
      %s513 = int_to_ptr.vmem [resolvable:$true] %s512
      %515 = dma.vmem_to_hbm [thread:$0]  %s513, 128, %s3, [#allocation4]
    $region29: #{_autoencoder_forward_impl.1} parent=1 // pred_fallthru
      _
    // Predicated region
    $region30: #{_autoencoder_forward_impl.1} parent=1 // pred_check
      _
    $region31: #{_autoencoder_forward_impl.1} parent=1 // pred_check_branch
      %517 = sbr.rel (0) target = $region33
    $region32: #{_autoencoder_forward_impl.1} parent=1 // pred_region
      _
    $region33: #{_autoencoder_forward_impl.1} parent=1 // pred_fallthru
      _
    // Predicated region
    $region34: #{_autoencoder_forward_impl.1} parent=1 // pred_check
      _
    $region35: #{_autoencoder_forward_impl.1} parent=1 // pred_check_branch
      %519 = sbr.rel (0) target = $region37
    $region36: #{_autoencoder_forward_impl.1} parent=1 // pred_region
      %520 = dma.done [#allocation4], 128
    $region37: #{_autoencoder_forward_impl.1} parent=1 // pred_fallthru
      _
    // Predicated region
    $region38: #{_autoencoder_forward_impl.1} parent=1 // pred_check
      _
    $region39: #{_autoencoder_forward_impl.1} parent=1 // pred_check_branch
      %522 = sbr.rel (0) target = $region41
    $region40: #{_autoencoder_forward_impl.1} parent=1 // pred_region
      _
    $region41: #{_autoencoder_forward_impl.1} parent=1 // pred_fallthru
      _
    %523 = vsyncpa [#allocation3], 1
    %524 = vsyncpa [#allocation6], 1
    %525 = vsyncpa [#allocation4], 1

</llo_original>
